<compile_context>
chip_gen: v6e
topology: v6e:2x2x1
jax: 0.10.0
libtpu: 0.0.40
codegen_flags: <defaults>
</compile_context>

<pallas_src>
import jax
import jax.numpy as jnp
from jax.experimental import pallas as pl
from jax.experimental.pallas import tpu as pltpu


def _lstm_recurrence_kernel(xp_ref, whh_ref, h_out_ref, c_out_ref):
    """Run the full LSTM recurrence in one invocation.

    xp_ref  : (T, B, 4H)  precomputed x_t @ W_ih^T + (b_ih + b_hh) for all timesteps
    whh_ref : (H, 4H)     hidden->gates weights (transposed)
    h_out_ref, c_out_ref : (B, H)  final hidden / cell state
    """
    T, B, H4 = xp_ref.shape
    H = H4 // 4

    whh = whh_ref[...]                       # (H, 4H) — stays resident across the loop

    def step(t, carry):
        h_prev, c_prev = carry
        # Only the recurrent matmul sits on the serial dependency chain.
        gates = xp_ref[t] + jnp.dot(h_prev, whh,
                                    preferred_element_type=jnp.float32)   # (B, 4H)

        # Two full-vreg EUP passes instead of four sub-lane sliced transcendentals.
        sig = jax.nn.sigmoid(gates)          # (B, 4H)
        th = jnp.tanh(gates)                 # (B, 4H)

        i_g = sig[:, 0 * H:1 * H]
        f_g = sig[:, 1 * H:2 * H]
        g_g = th[:, 2 * H:3 * H]
        o_g = sig[:, 3 * H:4 * H]

        c_new = f_g * c_prev + i_g * g_g
        h_new = o_g * jnp.tanh(c_new)
        return h_new, c_new

    h0 = jnp.zeros((B, H), jnp.float32)
    c0 = jnp.zeros((B, H), jnp.float32)
    h_n, c_n = jax.lax.fori_loop(0, T, step, (h0, c0), unroll=True)

    h_out_ref[...] = h_n
    c_out_ref[...] = c_n


def lstm_encoder(input_seq, w_ih, w_hh, b_ih, b_hh):
    """Pallas equivalent of `_, (h, c) = nn.LSTM(input_size, hidden_size)(input_seq)`.

    input_seq : (T, B, I) float32
    w_ih      : (4H, I)  PyTorch weight_ih_l0
    w_hh      : (4H, H)  PyTorch weight_hh_l0
    b_ih, b_hh: (4H,)
    returns   : (h_n, c_n) each (1, B, H)
    """
    T, B, I = input_seq.shape
    H4 = w_ih.shape[0]
    H = H4 // 4

    x = jnp.asarray(input_seq, jnp.float32)
    wih_t = jnp.asarray(w_ih, jnp.float32).T          # (I, 4H)
    whh_t = jnp.asarray(w_hh, jnp.float32).T          # (H, 4H)
    bias = (jnp.asarray(b_ih, jnp.float32)
            + jnp.asarray(b_hh, jnp.float32)).reshape(1, 1, H4)

    # Hoist the input projection out of the serial recurrence: one batched
    # (T*B, I) @ (I, 4H) contraction + bias add for all timesteps.
    x_proj = jnp.einsum("tbi,ig->tbg", x, wih_t) + bias   # (T, B, 4H)

    # NOTE: weights kept in f32 for exact torch.nn.LSTM numerics; at these shapes the
    # kernel is latency-bound, not MXU-throughput-bound, so bf16 gains nothing.
    h_out, c_out = pl.pallas_call(
        _lstm_recurrence_kernel,
        out_shape=(jax.ShapeDtypeStruct((B, H), jnp.float32),
                   jax.ShapeDtypeStruct((B, H), jnp.float32)),
        grid=(1,),
        in_specs=[
            pl.BlockSpec((T, B, H4), lambda i: (0, 0, 0)),   # whole sequence (~8 KiB)
            pl.BlockSpec((H, H4), lambda i: (0, 0)),         # W_hh^T (whole)
        ],
        out_specs=(
            pl.BlockSpec((B, H), lambda i: (0, 0)),
            pl.BlockSpec((B, H), lambda i: (0, 0)),
        ),
        compiler_params=pltpu.CompilerParams(
            dimension_semantics=("arbitrary",)),
    )(x_proj, whh_t)

    # PyTorch returns (num_layers * num_directions, batch, hidden) = (1, B, H)
    return h_out[None, :, :], c_out[None, :, :]


def _lstm_reference(input_seq, w_ih, w_hh, b_ih, b_hh):
    """Pure-JAX reference matching torch.nn.LSTM single-layer semantics."""
    T, B, I = input_seq.shape
    H = w_hh.shape[1]
    wih_t, whh_t = w_ih.T, w_hh.T
    bias = b_ih + b_hh

    def step(carry, x_t):
        h, c = carry
        gates = x_t @ wih_t + h @ whh_t + bias
        i = jax.nn.sigmoid(gates[:, 0 * H:1 * H])
        f = jax.nn.sigmoid(gates[:, 1 * H:2 * H])
        g = jnp.tanh(gates[:, 2 * H:3 * H])
        o = jax.nn.sigmoid(gates[:, 3 * H:4 * H])
        c_new = f * c + i * g
        h_new = o * jnp.tanh(c_new)
        return (h_new, c_new), None

    h0 = jnp.zeros((B, H), jnp.float32)
    c0 = jnp.zeros((B, H), jnp.float32)
    (h_n, c_n), _ = jax.lax.scan(step, (h0, c0), input_seq)
    return h_n[None], c_n[None]


if __name__ == "__main__":
    # Small shapes implied by the module: seq=8, batch=2, input_size=16, hidden=32.
    T, B, I, H = 8, 2, 16, 32

    key = jax.random.PRNGKey(0)
    k_x, k_wih, k_whh, k_bih, k_bhh = jax.random.split(key, 5)
    bound = 1.0 / jnp.sqrt(H)  # PyTorch LSTM init: U(-1/sqrt(H), 1/sqrt(H))

    input_seq = jax.random.normal(k_x, (T, B, I), jnp.float32)
    w_ih = jax.random.uniform(k_wih, (4 * H, I), jnp.float32, -bound, bound)
    w_hh = jax.random.uniform(k_whh, (4 * H, H), jnp.float32, -bound, bound)
    b_ih = jax.random.uniform(k_bih, (4 * H,), jnp.float32, -bound, bound)
    b_hh = jax.random.uniform(k_bhh, (4 * H,), jnp.float32, -bound, bound)

    h_n, c_n = lstm_encoder(input_seq, w_ih, w_hh, b_ih, b_hh)
    jax.block_until_ready((h_n, c_n))

    h_ref, c_ref = _lstm_reference(input_seq, w_ih, w_hh, b_ih, b_hh)
    assert h_n.shape == (1, B, H) and c_n.shape == (1, B, H)
    assert jnp.allclose(h_n, h_ref, atol=1e-5, rtol=1e-5)
    assert jnp.allclose(c_n, c_ref, atol=1e-5, rtol=1e-5)

    print("KERNEL_OK")
</pallas_src>

<mosaic_0001>
module attributes {stable_mosaic.version = 11 : i64} {
  func.func @_lstm_recurrence_kernel(%arg0: i32, %arg1: memref<8x2x128xf32, #tpu.memory_space<vmem>>, %arg2: memref<32x128xf32, #tpu.memory_space<vmem>>, %arg3: memref<2x32xf32, #tpu.memory_space<vmem>>, %arg4: memref<2x32xf32, #tpu.memory_space<vmem>>) attributes {dimension_semantics = [#tpu.dimension_semantics<arbitrary>], iteration_bounds = array<i64: 1>, scalar_prefetch = 0 : i64, scratch_operands = 0 : i64, tpu.core_type = #tpu.core_type<tc>, window_params = [{pipeline_mode = #tpu.pipeline_mode<synchronous>, transform_indices = @transform_0, window_bounds = array<i64: 8, 2, 128>}, {pipeline_mode = #tpu.pipeline_mode<synchronous>, transform_indices = @transform_1, window_bounds = array<i64: 32, 128>}, {pipeline_mode = #tpu.pipeline_mode<synchronous>, transform_indices = @transform_2, window_bounds = array<i64: 2, 32>}, {pipeline_mode = #tpu.pipeline_mode<synchronous>, transform_indices = @transform_3, window_bounds = array<i64: 2, 32>}]} {
    %c0 = arith.constant 0 : index
    %c0_0 = arith.constant 0 : index
    %0 = vector.load %arg2[%c0, %c0_0] : memref<32x128xf32, #tpu.memory_space<vmem>>, vector<32x128xf32>
    %cst = arith.constant 0.000000e+00 : f32
    %1 = vector.broadcast %cst : f32 to vector<2x32xf32>
    %cst_1 = arith.constant 0.000000e+00 : f32
    %2 = vector.broadcast %cst_1 : f32 to vector<2x32xf32>
    %c0_i32 = arith.constant 0 : i32
    %3 = arith.index_cast %c0_i32 : i32 to index
    %c0_2 = arith.constant 0 : index
    %c0_3 = arith.constant 0 : index
    %4 = vector.load %arg1[%3, %c0_2, %c0_3] : memref<8x2x128xf32, #tpu.memory_space<vmem>>, vector<1x2x128xf32>
    %5 = vector.shape_cast %4 : vector<1x2x128xf32> to vector<2x128xf32>
    %cst_4 = arith.constant dense<0.000000e+00> : vector<2x128xf32>
    %6 = tpu.matmul %1, %0, %cst_4 {dimension_numbers = #tpu.dot_dimension_numbers<[1], [0], [0], [1], [0, 0, 1, 1], [], []>} : vector<2x32xf32>, vector<32x128xf32>, vector<2x128xf32> -> vector<2x128xf32>
    %7 = arith.addf %5, %6 : vector<2x128xf32>
    %8 = arith.negf %7 : vector<2x128xf32>
    %9 = math.exp %8 : vector<2x128xf32>
    %cst_5 = arith.constant 1.000000e+00 : f32
    %10 = vector.broadcast %cst_5 : f32 to vector<2x128xf32>
    %11 = arith.addf %10, %9 : vector<2x128xf32>
    %12 = arith.divf %10, %11 : vector<2x128xf32>
    %13 = math.tanh %7 : vector<2x128xf32>
    %14 = vector.extract_strided_slice %12 {offsets = [0, 0], sizes = [2, 32], strides = [1, 1]} : vector<2x128xf32> to vector<2x32xf32>
    %15 = vector.extract_strided_slice %12 {offsets = [0, 32], sizes = [2, 32], strides = [1, 1]} : vector<2x128xf32> to vector<2x32xf32>
    %16 = vector.extract_strided_slice %13 {offsets = [0, 64], sizes = [2, 32], strides = [1, 1]} : vector<2x128xf32> to vector<2x32xf32>
    %17 = vector.extract_strided_slice %12 {offsets = [0, 96], sizes = [2, 32], strides = [1, 1]} : vector<2x128xf32> to vector<2x32xf32>
    %18 = arith.mulf %15, %2 : vector<2x32xf32>
    %19 = arith.mulf %14, %16 : vector<2x32xf32>
    %20 = arith.addf %18, %19 : vector<2x32xf32>
    %21 = math.tanh %20 : vector<2x32xf32>
    %22 = arith.mulf %17, %21 : vector<2x32xf32>
    %c1_i32 = arith.constant 1 : i32
    %23 = arith.index_cast %c1_i32 : i32 to index
    %c0_6 = arith.constant 0 : index
    %c0_7 = arith.constant 0 : index
    %24 = vector.load %arg1[%23, %c0_6, %c0_7] : memref<8x2x128xf32, #tpu.memory_space<vmem>>, vector<1x2x128xf32>
    %25 = vector.shape_cast %24 : vector<1x2x128xf32> to vector<2x128xf32>
    %cst_8 = arith.constant dense<0.000000e+00> : vector<2x128xf32>
    %26 = tpu.matmul %22, %0, %cst_8 {dimension_numbers = #tpu.dot_dimension_numbers<[1], [0], [0], [1], [0, 0, 1, 1], [], []>} : vector<2x32xf32>, vector<32x128xf32>, vector<2x128xf32> -> vector<2x128xf32>
    %27 = arith.addf %25, %26 : vector<2x128xf32>
    %28 = arith.negf %27 : vector<2x128xf32>
    %29 = math.exp %28 : vector<2x128xf32>
    %cst_9 = arith.constant 1.000000e+00 : f32
    %30 = vector.broadcast %cst_9 : f32 to vector<2x128xf32>
    %31 = arith.addf %30, %29 : vector<2x128xf32>
    %32 = arith.divf %30, %31 : vector<2x128xf32>
    %33 = math.tanh %27 : vector<2x128xf32>
    %34 = vector.extract_strided_slice %32 {offsets = [0, 0], sizes = [2, 32], strides = [1, 1]} : vector<2x128xf32> to vector<2x32xf32>
    %35 = vector.extract_strided_slice %32 {offsets = [0, 32], sizes = [2, 32], strides = [1, 1]} : vector<2x128xf32> to vector<2x32xf32>
    %36 = vector.extract_strided_slice %33 {offsets = [0, 64], sizes = [2, 32], strides = [1, 1]} : vector<2x128xf32> to vector<2x32xf32>
    %37 = vector.extract_strided_slice %32 {offsets = [0, 96], sizes = [2, 32], strides = [1, 1]} : vector<2x128xf32> to vector<2x32xf32>
    %38 = arith.mulf %35, %20 : vector<2x32xf32>
    %39 = arith.mulf %34, %36 : vector<2x32xf32>
    %40 = arith.addf %38, %39 : vector<2x32xf32>
    %41 = math.tanh %40 : vector<2x32xf32>
    %42 = arith.mulf %37, %41 : vector<2x32xf32>
    %c2_i32 = arith.constant 2 : i32
    %43 = arith.index_cast %c2_i32 : i32 to index
    %c0_10 = arith.constant 0 : index
    %c0_11 = arith.constant 0 : index
    %44 = vector.load %arg1[%43, %c0_10, %c0_11] : memref<8x2x128xf32, #tpu.memory_space<vmem>>, vector<1x2x128xf32>
    %45 = vector.shape_cast %44 : vector<1x2x128xf32> to vector<2x128xf32>
    %cst_12 = arith.constant dense<0.000000e+00> : vector<2x128xf32>
    %46 = tpu.matmul %42, %0, %cst_12 {dimension_numbers = #tpu.dot_dimension_numbers<[1], [0], [0], [1], [0, 0, 1, 1], [], []>} : vector<2x32xf32>, vector<32x128xf32>, vector<2x128xf32> -> vector<2x128xf32>
    %47 = arith.addf %45, %46 : vector<2x128xf32>
    %48 = arith.negf %47 : vector<2x128xf32>
    %49 = math.exp %48 : vector<2x128xf32>
    %cst_13 = arith.constant 1.000000e+00 : f32
    %50 = vector.broadcast %cst_13 : f32 to vector<2x128xf32>
    %51 = arith.addf %50, %49 : vector<2x128xf32>
    %52 = arith.divf %50, %51 : vector<2x128xf32>
    %53 = math.tanh %47 : vector<2x128xf32>
    %54 = vector.extract_strided_slice %52 {offsets = [0, 0], sizes = [2, 32], strides = [1, 1]} : vector<2x128xf32> to vector<2x32xf32>
    %55 = vector.extract_strided_slice %52 {offsets = [0, 32], sizes = [2, 32], strides = [1, 1]} : vector<2x128xf32> to vector<2x32xf32>
    %56 = vector.extract_strided_slice %53 {offsets = [0, 64], sizes = [2, 32], strides = [1, 1]} : vector<2x128xf32> to vector<2x32xf32>
    %57 = vector.extract_strided_slice %52 {offsets = [0, 96], sizes = [2, 32], strides = [1, 1]} : vector<2x128xf32> to vector<2x32xf32>
    %58 = arith.mulf %55, %40 : vector<2x32xf32>
    %59 = arith.mulf %54, %56 : vector<2x32xf32>
    %60 = arith.addf %58, %59 : vector<2x32xf32>
    %61 = math.tanh %60 : vector<2x32xf32>
    %62 = arith.mulf %57, %61 : vector<2x32xf32>
    %c3_i32 = arith.constant 3 : i32
    %63 = arith.index_cast %c3_i32 : i32 to index
    %c0_14 = arith.constant 0 : index
    %c0_15 = arith.constant 0 : index
    %64 = vector.load %arg1[%63, %c0_14, %c0_15] : memref<8x2x128xf32, #tpu.memory_space<vmem>>, vector<1x2x128xf32>
    %65 = vector.shape_cast %64 : vector<1x2x128xf32> to vector<2x128xf32>
    %cst_16 = arith.constant dense<0.000000e+00> : vector<2x128xf32>
    %66 = tpu.matmul %62, %0, %cst_16 {dimension_numbers = #tpu.dot_dimension_numbers<[1], [0], [0], [1], [0, 0, 1, 1], [], []>} : vector<2x32xf32>, vector<32x128xf32>, vector<2x128xf32> -> vector<2x128xf32>
    %67 = arith.addf %65, %66 : vector<2x128xf32>
    %68 = arith.negf %67 : vector<2x128xf32>
    %69 = math.exp %68 : vector<2x128xf32>
    %cst_17 = arith.constant 1.000000e+00 : f32
    %70 = vector.broadcast %cst_17 : f32 to vector<2x128xf32>
    %71 = arith.addf %70, %69 : vector<2x128xf32>
    %72 = arith.divf %70, %71 : vector<2x128xf32>
    %73 = math.tanh %67 : vector<2x128xf32>
    %74 = vector.extract_strided_slice %72 {offsets = [0, 0], sizes = [2, 32], strides = [1, 1]} : vector<2x128xf32> to vector<2x32xf32>
    %75 = vector.extract_strided_slice %72 {offsets = [0, 32], sizes = [2, 32], strides = [1, 1]} : vector<2x128xf32> to vector<2x32xf32>
    %76 = vector.extract_strided_slice %73 {offsets = [0, 64], sizes = [2, 32], strides = [1, 1]} : vector<2x128xf32> to vector<2x32xf32>
    %77 = vector.extract_strided_slice %72 {offsets = [0, 96], sizes = [2, 32], strides = [1, 1]} : vector<2x128xf32> to vector<2x32xf32>
    %78 = arith.mulf %75, %60 : vector<2x32xf32>
    %79 = arith.mulf %74, %76 : vector<2x32xf32>
    %80 = arith.addf %78, %79 : vector<2x32xf32>
    %81 = math.tanh %80 : vector<2x32xf32>
    %82 = arith.mulf %77, %81 : vector<2x32xf32>
    %c4_i32 = arith.constant 4 : i32
    %83 = arith.index_cast %c4_i32 : i32 to index
    %c0_18 = arith.constant 0 : index
    %c0_19 = arith.constant 0 : index
    %84 = vector.load %arg1[%83, %c0_18, %c0_19] : memref<8x2x128xf32, #tpu.memory_space<vmem>>, vector<1x2x128xf32>
    %85 = vector.shape_cast %84 : vector<1x2x128xf32> to vector<2x128xf32>
    %cst_20 = arith.constant dense<0.000000e+00> : vector<2x128xf32>
    %86 = tpu.matmul %82, %0, %cst_20 {dimension_numbers = #tpu.dot_dimension_numbers<[1], [0], [0], [1], [0, 0, 1, 1], [], []>} : vector<2x32xf32>, vector<32x128xf32>, vector<2x128xf32> -> vector<2x128xf32>
    %87 = arith.addf %85, %86 : vector<2x128xf32>
    %88 = arith.negf %87 : vector<2x128xf32>
    %89 = math.exp %88 : vector<2x128xf32>
    %cst_21 = arith.constant 1.000000e+00 : f32
    %90 = vector.broadcast %cst_21 : f32 to vector<2x128xf32>
    %91 = arith.addf %90, %89 : vector<2x128xf32>
    %92 = arith.divf %90, %91 : vector<2x128xf32>
    %93 = math.tanh %87 : vector<2x128xf32>
    %94 = vector.extract_strided_slice %92 {offsets = [0, 0], sizes = [2, 32], strides = [1, 1]} : vector<2x128xf32> to vector<2x32xf32>
    %95 = vector.extract_strided_slice %92 {offsets = [0, 32], sizes = [2, 32], strides = [1, 1]} : vector<2x128xf32> to vector<2x32xf32>
    %96 = vector.extract_strided_slice %93 {offsets = [0, 64], sizes = [2, 32], strides = [1, 1]} : vector<2x128xf32> to vector<2x32xf32>
    %97 = vector.extract_strided_slice %92 {offsets = [0, 96], sizes = [2, 32], strides = [1, 1]} : vector<2x128xf32> to vector<2x32xf32>
    %98 = arith.mulf %95, %80 : vector<2x32xf32>
    %99 = arith.mulf %94, %96 : vector<2x32xf32>
    %100 = arith.addf %98, %99 : vector<2x32xf32>
    %101 = math.tanh %100 : vector<2x32xf32>
    %102 = arith.mulf %97, %101 : vector<2x32xf32>
    %c5_i32 = arith.constant 5 : i32
    %103 = arith.index_cast %c5_i32 : i32 to index
    %c0_22 = arith.constant 0 : index
    %c0_23 = arith.constant 0 : index
    %104 = vector.load %arg1[%103, %c0_22, %c0_23] : memref<8x2x128xf32, #tpu.memory_space<vmem>>, vector<1x2x128xf32>
    %105 = vector.shape_cast %104 : vector<1x2x128xf32> to vector<2x128xf32>
    %cst_24 = arith.constant dense<0.000000e+00> : vector<2x128xf32>
    %106 = tpu.matmul %102, %0, %cst_24 {dimension_numbers = #tpu.dot_dimension_numbers<[1], [0], [0], [1], [0, 0, 1, 1], [], []>} : vector<2x32xf32>, vector<32x128xf32>, vector<2x128xf32> -> vector<2x128xf32>
    %107 = arith.addf %105, %106 : vector<2x128xf32>
    %108 = arith.negf %107 : vector<2x128xf32>
    %109 = math.exp %108 : vector<2x128xf32>
    %cst_25 = arith.constant 1.000000e+00 : f32
    %110 = vector.broadcast %cst_25 : f32 to vector<2x128xf32>
    %111 = arith.addf %110, %109 : vector<2x128xf32>
    %112 = arith.divf %110, %111 : vector<2x128xf32>
    %113 = math.tanh %107 : vector<2x128xf32>
    %114 = vector.extract_strided_slice %112 {offsets = [0, 0], sizes = [2, 32], strides = [1, 1]} : vector<2x128xf32> to vector<2x32xf32>
    %115 = vector.extract_strided_slice %112 {offsets = [0, 32], sizes = [2, 32], strides = [1, 1]} : vector<2x128xf32> to vector<2x32xf32>
    %116 = vector.extract_strided_slice %113 {offsets = [0, 64], sizes = [2, 32], strides = [1, 1]} : vector<2x128xf32> to vector<2x32xf32>
    %117 = vector.extract_strided_slice %112 {offsets = [0, 96], sizes = [2, 32], strides = [1, 1]} : vector<2x128xf32> to vector<2x32xf32>
    %118 = arith.mulf %115, %100 : vector<2x32xf32>
    %119 = arith.mulf %114, %116 : vector<2x32xf32>
    %120 = arith.addf %118, %119 : vector<2x32xf32>
    %121 = math.tanh %120 : vector<2x32xf32>
    %122 = arith.mulf %117, %121 : vector<2x32xf32>
    %c6_i32 = arith.constant 6 : i32
    %123 = arith.index_cast %c6_i32 : i32 to index
    %c0_26 = arith.constant 0 : index
    %c0_27 = arith.constant 0 : index
    %124 = vector.load %arg1[%123, %c0_26, %c0_27] : memref<8x2x128xf32, #tpu.memory_space<vmem>>, vector<1x2x128xf32>
    %125 = vector.shape_cast %124 : vector<1x2x128xf32> to vector<2x128xf32>
    %cst_28 = arith.constant dense<0.000000e+00> : vector<2x128xf32>
    %126 = tpu.matmul %122, %0, %cst_28 {dimension_numbers = #tpu.dot_dimension_numbers<[1], [0], [0], [1], [0, 0, 1, 1], [], []>} : vector<2x32xf32>, vector<32x128xf32>, vector<2x128xf32> -> vector<2x128xf32>
    %127 = arith.addf %125, %126 : vector<2x128xf32>
    %128 = arith.negf %127 : vector<2x128xf32>
    %129 = math.exp %128 : vector<2x128xf32>
    %cst_29 = arith.constant 1.000000e+00 : f32
    %130 = vector.broadcast %cst_29 : f32 to vector<2x128xf32>
    %131 = arith.addf %130, %129 : vector<2x128xf32>
    %132 = arith.divf %130, %131 : vector<2x128xf32>
    %133 = math.tanh %127 : vector<2x128xf32>
    %134 = vector.extract_strided_slice %132 {offsets = [0, 0], sizes = [2, 32], strides = [1, 1]} : vector<2x128xf32> to vector<2x32xf32>
    %135 = vector.extract_strided_slice %132 {offsets = [0, 32], sizes = [2, 32], strides = [1, 1]} : vector<2x128xf32> to vector<2x32xf32>
    %136 = vector.extract_strided_slice %133 {offsets = [0, 64], sizes = [2, 32], strides = [1, 1]} : vector<2x128xf32> to vector<2x32xf32>
    %137 = vector.extract_strided_slice %132 {offsets = [0, 96], sizes = [2, 32], strides = [1, 1]} : vector<2x128xf32> to vector<2x32xf32>
    %138 = arith.mulf %135, %120 : vector<2x32xf32>
    %139 = arith.mulf %134, %136 : vector<2x32xf32>
    %140 = arith.addf %138, %139 : vector<2x32xf32>
    %141 = math.tanh %140 : vector<2x32xf32>
    %142 = arith.mulf %137, %141 : vector<2x32xf32>
    %c7_i32 = arith.constant 7 : i32
    %143 = arith.index_cast %c7_i32 : i32 to index
    %c0_30 = arith.constant 0 : index
    %c0_31 = arith.constant 0 : index
    %144 = vector.load %arg1[%143, %c0_30, %c0_31] : memref<8x2x128xf32, #tpu.memory_space<vmem>>, vector<1x2x128xf32>
    %145 = vector.shape_cast %144 : vector<1x2x128xf32> to vector<2x128xf32>
    %cst_32 = arith.constant dense<0.000000e+00> : vector<2x128xf32>
    %146 = tpu.matmul %142, %0, %cst_32 {dimension_numbers = #tpu.dot_dimension_numbers<[1], [0], [0], [1], [0, 0, 1, 1], [], []>} : vector<2x32xf32>, vector<32x128xf32>, vector<2x128xf32> -> vector<2x128xf32>
    %147 = arith.addf %145, %146 : vector<2x128xf32>
    %148 = arith.negf %147 : vector<2x128xf32>
    %149 = math.exp %148 : vector<2x128xf32>
    %cst_33 = arith.constant 1.000000e+00 : f32
    %150 = vector.broadcast %cst_33 : f32 to vector<2x128xf32>
    %151 = arith.addf %150, %149 : vector<2x128xf32>
    %152 = arith.divf %150, %151 : vector<2x128xf32>
    %153 = math.tanh %147 : vector<2x128xf32>
    %154 = vector.extract_strided_slice %152 {offsets = [0, 0], sizes = [2, 32], strides = [1, 1]} : vector<2x128xf32> to vector<2x32xf32>
    %155 = vector.extract_strided_slice %152 {offsets = [0, 32], sizes = [2, 32], strides = [1, 1]} : vector<2x128xf32> to vector<2x32xf32>
    %156 = vector.extract_strided_slice %153 {offsets = [0, 64], sizes = [2, 32], strides = [1, 1]} : vector<2x128xf32> to vector<2x32xf32>
    %157 = vector.extract_strided_slice %152 {offsets = [0, 96], sizes = [2, 32], strides = [1, 1]} : vector<2x128xf32> to vector<2x32xf32>
    %158 = arith.mulf %155, %140 : vector<2x32xf32>
    %159 = arith.mulf %154, %156 : vector<2x32xf32>
    %160 = arith.addf %158, %159 : vector<2x32xf32>
    %161 = math.tanh %160 : vector<2x32xf32>
    %162 = arith.mulf %157, %161 : vector<2x32xf32>
    %c8_i32 = arith.constant 8 : i32
    %c0_34 = arith.constant 0 : index
    %c0_35 = arith.constant 0 : index
    %163 = vector.load %arg3[%c0_34, %c0_35] : memref<2x32xf32, #tpu.memory_space<vmem>>, vector<2x32xf32>
    tpu.vector_store %arg3[%c0_34, %c0_35], %162 {strides = array<i32>} : memref<2x32xf32, #tpu.memory_space<vmem>>, vector<2x32xf32>,
    %c0_36 = arith.constant 0 : index
    %c0_37 = arith.constant 0 : index
    %164 = vector.load %arg4[%c0_36, %c0_37] : memref<2x32xf32, #tpu.memory_space<vmem>>, vector<2x32xf32>
    tpu.vector_store %arg4[%c0_36, %c0_37], %160 {strides = array<i32>} : memref<2x32xf32, #tpu.memory_space<vmem>>, vector<2x32xf32>,
    return
  }
  func.func @transform_0(%arg0: i32) -> (i32, i32, i32) {
    %c0_i32 = arith.constant 0 : i32
    %c0_i32_0 = arith.constant 0 : i32
    %c0_i32_1 = arith.constant 0 : i32
    %c0_i32_2 = arith.constant 0 : i32
    return %c0_i32, %c0_i32_0, %c0_i32_1 : i32, i32, i32
  }
  func.func @transform_1(%arg0: i32) -> (i32, i32) {
    %c0_i32 = arith.constant 0 : i32
    %c0_i32_0 = arith.constant 0 : i32
    %c0_i32_1 = arith.constant 0 : i32
    return %c0_i32, %c0_i32_0 : i32, i32
  }
  func.func @transform_2(%arg0: i32) -> (i32, i32) {
    %c0_i32 = arith.constant 0 : i32
    %c0_i32_0 = arith.constant 0 : i32
    %c0_i32_1 = arith.constant 0 : i32
    return %c0_i32, %c0_i32_0 : i32, i32
  }
  func.func @transform_3(%arg0: i32) -> (i32, i32) {
    %c0_i32 = arith.constant 0 : i32
    %c0_i32_0 = arith.constant 0 : i32
    %c0_i32_1 = arith.constant 0 : i32
    return %c0_i32, %c0_i32_0 : i32, i32
  }
}

</mosaic_0001>

<llo_original>
// kernel: tpu_custom_call.1
$region0: #{tpu_custom_call.1}
  #allocation0 [shape = 'u32[]', space=smem, size = 0x4, offset = 0x4, fixed_abs, tag = 'smem constant byte address 0x4 - core index']
  #allocation1 [shape = 'u32[144,128]{1,0:T(1,128)}', space=vmem, size = 0x12000, scoped, tag = 'internal scratch']
  %s0 = inlined_call_operand.hbm [shape: f32[8,2,128], index: 0, kind: input, shape index: {}]
  %s1 = inlined_call_operand.hbm [shape: f32[32,128], index: 1, kind: input, shape index: {}]
  %s2 = inlined_call_operand.hbm [shape: f32[2,32], index: 2, kind: output, shape index: {0}]
  %s3 = inlined_call_operand.hbm [shape: f32[2,32], index: 3, kind: output, shape index: {1}]
  %4 = xla_tuple %s2, %s3
  %s5 = sld [smem:[#allocation0]]
  $region34: #{tpu_custom_call.1} parent=0
    _
  %s7 = ssub.s32 1, %s5
  %s8 = scalar_select 0, %s7, %s5
  $region1: #{tpu_custom_call.1} parent=0
    #allocation2 [shape = 'u8[8192]{0}', space=vmem, size = 0x2000, scoped, tag = 'input window, operand 0, single buffered']
    #allocation3 [shape = 's32[1]{0}', space=sflag, size = 0x4, scoped, tag = 'scoped memory for tpu_custom_call.1']
    #allocation4 [shape = 's32[1]{0}', space=sflag, size = 0x4, scoped, tag = 'scoped memory for tpu_custom_call.1']
    #allocation5 [shape = 'u8[16384]{0}', space=vmem, size = 0x4000, scoped, tag = 'input window, operand 1, single buffered']
    #allocation6 [shape = 's32[1]{0}', space=sflag, size = 0x4, scoped, tag = 'scoped memory for tpu_custom_call.1']
    #allocation7 [shape = 'u8[1024]{0}', space=vmem, size = 0x400, scoped, tag = 'output window, operand 0, single buffered']
    #allocation8 [shape = 'u8[1024]{0}', space=vmem, size = 0x400, scoped, tag = 'output window, operand 1, single buffered']
    #allocation9 [shape = 's32[1]{0}', space=sflag, size = 0x4, scoped, tag = 'scoped memory for tpu_custom_call.1']
    %9 = vsyncpa [#allocation3], 0
    %10 = vsyncpa [#allocation6], 0
    %11 = vsyncpa [#allocation4], 0
    %12 = vsyncpa [#allocation9], 0
    // Predicated region
    $region2: #{tpu_custom_call.1} parent=1 // pred_check
      _
    $region3: #{tpu_custom_call.1} parent=1 // pred_check_branch
      %14 = sbr.rel (0) target = $region5
    $region4: #{tpu_custom_call.1} parent=1 // pred_region
      %s16 = ssub.s32 256, 256
      %17 = vsyncadd [#allocation3], %s16
      %s18 = sshll.u32 [#allocation2], 4
      %s19 = int_to_ptr.vmem [resolvable:$true] %s18
      %24 = dma.hbm_to_vmem [thread:$0]  %s0, 256, %s19, [#allocation3], 32, 32, 2
    $region5: #{tpu_custom_call.1} parent=1 // pred_fallthru
      _
    // Predicated region
    $region6: #{tpu_custom_call.1} parent=1 // pred_check
      _
    $region7: #{tpu_custom_call.1} parent=1 // pred_check_branch
      %26 = sbr.rel (0) target = $region9
    $region8: #{tpu_custom_call.1} parent=1 // pred_region
      %s28 = ssub.s32 512, 512
      %29 = vsyncadd [#allocation6], %s28
      %s30 = sshll.u32 [#allocation5], 4
      %s31 = int_to_ptr.vmem [resolvable:$true] %s30
      %36 = dma.hbm_to_vmem [thread:$0]  %s1, 512, %s31, [#allocation6], 128, 128, 8
    $region9: #{tpu_custom_call.1} parent=1 // pred_fallthru
      _
    // Predicated region
    $region10: #{tpu_custom_call.1} parent=1 // pred_check
      _
    $region11: #{tpu_custom_call.1} parent=1 // pred_check_branch
      %38 = sbr.rel (0) target = $region13
    $region12: #{tpu_custom_call.1} parent=1 // pred_region
      %39 = dma.done [#allocation3], 256
    $region13: #{tpu_custom_call.1} parent=1 // pred_fallthru
      _
    // Predicated region
    $region14: #{tpu_custom_call.1} parent=1 // pred_check
      _
    $region15: #{tpu_custom_call.1} parent=1 // pred_check_branch
      %41 = sbr.rel (0) target = $region17
    $region16: #{tpu_custom_call.1} parent=1 // pred_region
      %42 = dma.done [#allocation6], 512
    $region17: #{tpu_custom_call.1} parent=1 // pred_fallthru
      _
    %v43 = vld [vmem:[#allocation5] sm:$0xff]
    %v44 = vld [vmem:[#allocation5 + $0x8] sm:$0xff]
    %v45 = vld [vmem:[#allocation5 + $0x10] sm:$0xff]
    %v46 = vld [vmem:[#allocation5 + $0x18] sm:$0xff]
    %v47 = vld [vmem:[#allocation2] sm:$0x3]
    %vm48 = vcmask 261120
    %v50 = vsel %vm48, 0.0, 0
    %52 = vmatprep.subr.mxu0 0.0
    %53 = vmatpush1.msra.mxu0 0.0
    %54 = vmatprep.subr.mxu0 0.0
    %55 = vmatpush1.msra.mxu0 0.0
    %56 = vmatprep.subr.mxu0 0.0
    %57 = vmatpush1.msra.mxu0 0.0
    %58 = vmatprep.subr.mxu0 0.0
    %59 = vmatpush1.msra.mxu0 0.0
    %60 = vmatprep.subr.mxu0 0.0
    %61 = vmatpush1.msra.mxu0 0.0
    %62 = vmatprep.subr.mxu0 0.0
    %63 = vmatpush1.msra.mxu0 0.0
    %64 = vmatprep.subr.mxu0 0.0
    %65 = vmatpush1.msra.mxu0 0.0
    %66 = vmatprep.subr.mxu0 0.0
    %67 = vmatpush1.msra.mxu0 0.0
    %68 = vmatprep.subr.mxu0 0.0
    %69 = vmatpush1.msra.mxu0 0.0
    %70 = vmatprep.subr.mxu0 0.0
    %71 = vmatpush1.msra.mxu0 0.0
    %72 = vmatprep.subr.mxu0 0.0
    %73 = vmatpush1.msra.mxu0 0.0
    %74 = vmatprep.subr.mxu0 0.0
    %75 = vmatpush1.msra.mxu0 0.0
    %76 = vmatprep.subr.mxu0 0.0
    %77 = vmatpush1.msra.mxu0 %v46
    %78 = vmatprep.subr.mxu0 0.0
    %79 = vmatpush1.msra.mxu0 %v45
    %80 = vmatprep.subr.mxu0 0.0
    %81 = vmatpush1.msra.mxu0 %v44
    %82 = vmatprep.subr.mxu0 0.0
    %83 = vmatpush1.msra.mxu0 %v43
    %84 = vmatprep.subr.mxu0 0.0
    %85 = vmatpush2.msra.mxu0 0.0
    %86 = vmatprep.subr.mxu0 0.0
    %87 = vmatpush2.msra.mxu0 0.0
    %88 = vmatprep.subr.mxu0 0.0
    %89 = vmatpush2.msra.mxu0 0.0
    %90 = vmatprep.subr.mxu0 0.0
    %91 = vmatpush2.msra.mxu0 0.0
    %92 = vmatprep.subr.mxu0 0.0
    %93 = vmatpush2.msra.mxu0 0.0
    %94 = vmatprep.subr.mxu0 0.0
    %95 = vmatpush2.msra.mxu0 0.0
    %96 = vmatprep.subr.mxu0 0.0
    %97 = vmatpush2.msra.mxu0 0.0
    %98 = vmatprep.subr.mxu0 0.0
    %99 = vmatpush2.msra.mxu0 0.0
    %100 = vmatprep.subr.mxu0 0.0
    %101 = vmatpush2.msra.mxu0 0.0
    %102 = vmatprep.subr.mxu0 0.0
    %103 = vmatpush2.msra.mxu0 0.0
    %104 = vmatprep.subr.mxu0 0.0
    %105 = vmatpush2.msra.mxu0 0.0
    %106 = vmatprep.subr.mxu0 0.0
    %107 = vmatpush2.msra.mxu0 0.0
    %108 = vmatprep.subr.mxu0 0.0
    %109 = vmatpush2.msra.mxu0 0.0
    %110 = vmatprep.subr.mxu0 0.0
    %111 = vmatpush2.msra.mxu0 0.0
    %112 = vmatprep.subr.mxu0 0.0
    %113 = vmatpush2.msra.mxu0 0.0
    %114 = vmatprep.subr.mxu0 0.0
    %115 = vmatpush2.msra.mxu0 0.0
    %116 = vmatprep.mubr.f32.mxu0 0.0
    %117 = vmatmul.mubr.f32.gmra.mxu0 %v50
    %v118 = vpop.f32.mrf.mxu0
    %v119 = vadd.f32 0.0, %v118
    %v120 = vpop.f32.mrf.mxu0
    %121 = vdwg.mxu0
    %v122 = vadd.f32 %v47, %v119
    %v123 = vxor.u32 %v122, 2147483648
    %v124 = vmul.f32 %v123, 1.442695
    %v125 = vpow.pop %v124
    %v126 = vadd.f32 %v125, 1.0
    %v127 = vrcp.pop %v126
    %v128 = vmul.f32 1.0, %v127
    %v129 = vtanh.pop %v122
    %v130 = vmul.f32 %v128, 0.0
    %132 = vrot.lane.b32.xlu0 %v129, 64
    %v133 = vpop.permute.xlu0 %132
    %v135 = vmul.f32 %v128, %v133
    %137 = vrot.lane.b32.xlu0 %v135, 32
    %v138 = vpop.permute.xlu0 %137
    %v140 = vadd.f32 %v130, %v138
    %v141 = vtanh.pop %v140
    %143 = vrot.lane.b32.xlu0 %v141, 64
    %v144 = vpop.permute.xlu0 %143
    %v146 = vmul.f32 %v128, %v144
    %s147 = scalar_lea.vmem [#allocation2], 2
    %v148 = vld [vmem:[%s147] sm:$0x3]
    %150 = vrot.lane.b32.xlu0 %v146, 32
    %v151 = vpop.permute.xlu0 %150
    %v152 = vsel %vm48, %v151, 0
    %154 = vmatprep.subr.mxu0 0.0
    %155 = vmatpush1.msra.mxu0 0.0
    %156 = vmatprep.subr.mxu0 0.0
    %157 = vmatpush1.msra.mxu0 0.0
    %158 = vmatprep.subr.mxu0 0.0
    %159 = vmatpush1.msra.mxu0 0.0
    %160 = vmatprep.subr.mxu0 0.0
    %161 = vmatpush1.msra.mxu0 0.0
    %162 = vmatprep.subr.mxu0 0.0
    %163 = vmatpush1.msra.mxu0 0.0
    %164 = vmatprep.subr.mxu0 0.0
    %165 = vmatpush1.msra.mxu0 0.0
    %166 = vmatprep.subr.mxu0 0.0
    %167 = vmatpush1.msra.mxu0 0.0
    %168 = vmatprep.subr.mxu0 0.0
    %169 = vmatpush1.msra.mxu0 0.0
    %170 = vmatprep.subr.mxu0 0.0
    %171 = vmatpush1.msra.mxu0 0.0
    %172 = vmatprep.subr.mxu0 0.0
    %173 = vmatpush1.msra.mxu0 0.0
    %174 = vmatprep.subr.mxu0 0.0
    %175 = vmatpush1.msra.mxu0 0.0
    %176 = vmatprep.subr.mxu0 0.0
    %177 = vmatpush1.msra.mxu0 0.0
    %178 = vmatprep.subr.mxu0 0.0
    %179 = vmatpush1.msra.mxu0 %v46
    %180 = vmatprep.subr.mxu0 0.0
    %181 = vmatpush1.msra.mxu0 %v45
    %182 = vmatprep.subr.mxu0 0.0
    %183 = vmatpush1.msra.mxu0 %v44
    %184 = vmatprep.subr.mxu0 0.0
    %185 = vmatpush1.msra.mxu0 %v43
    %186 = vmatprep.subr.mxu0 0.0
    %187 = vmatpush2.msra.mxu0 0.0
    %188 = vmatprep.subr.mxu0 0.0
    %189 = vmatpush2.msra.mxu0 0.0
    %190 = vmatprep.subr.mxu0 0.0
    %191 = vmatpush2.msra.mxu0 0.0
    %192 = vmatprep.subr.mxu0 0.0
    %193 = vmatpush2.msra.mxu0 0.0
    %194 = vmatprep.subr.mxu0 0.0
    %195 = vmatpush2.msra.mxu0 0.0
    %196 = vmatprep.subr.mxu0 0.0
    %197 = vmatpush2.msra.mxu0 0.0
    %198 = vmatprep.subr.mxu0 0.0
    %199 = vmatpush2.msra.mxu0 0.0
    %200 = vmatprep.subr.mxu0 0.0
    %201 = vmatpush2.msra.mxu0 0.0
    %202 = vmatprep.subr.mxu0 0.0
    %203 = vmatpush2.msra.mxu0 0.0
    %204 = vmatprep.subr.mxu0 0.0
    %205 = vmatpush2.msra.mxu0 0.0
    %206 = vmatprep.subr.mxu0 0.0
    %207 = vmatpush2.msra.mxu0 0.0
    %208 = vmatprep.subr.mxu0 0.0
    %209 = vmatpush2.msra.mxu0 0.0
    %210 = vmatprep.subr.mxu0 0.0
    %211 = vmatpush2.msra.mxu0 0.0
    %212 = vmatprep.subr.mxu0 0.0
    %213 = vmatpush2.msra.mxu0 0.0
    %214 = vmatprep.subr.mxu0 0.0
    %215 = vmatpush2.msra.mxu0 0.0
    %216 = vmatprep.subr.mxu0 0.0
    %217 = vmatpush2.msra.mxu0 0.0
    %218 = vmatprep.mubr.f32.mxu0 0.0
    %219 = vmatmul.mubr.f32.gmra.mxu0 %v152
    %v220 = vpop.f32.mrf.mxu0
    %v221 = vadd.f32 0.0, %v220
    %v222 = vpop.f32.mrf.mxu0
    %223 = vdwg.mxu0
    %v224 = vadd.f32 %v148, %v221
    %v225 = vxor.u32 %v224, 2147483648
    %v226 = vmul.f32 %v225, 1.442695
    %v227 = vpow.pop %v226
    %v228 = vadd.f32 %v227, 1.0
    %v229 = vrcp.pop %v228
    %v230 = vmul.f32 1.0, %v229
    %v231 = vtanh.pop %v224
    %v232 = vmul.f32 %v230, %v140
    %234 = vrot.lane.b32.xlu0 %v231, 64
    %v235 = vpop.permute.xlu0 %234
    %v237 = vmul.f32 %v230, %v235
    %239 = vrot.lane.b32.xlu0 %v237, 32
    %v240 = vpop.permute.xlu0 %239
    %v242 = vadd.f32 %v232, %v240
    %v243 = vtanh.pop %v242
    %245 = vrot.lane.b32.xlu0 %v243, 64
    %v246 = vpop.permute.xlu0 %245
    %v248 = vmul.f32 %v230, %v246
    %s249 = scalar_lea.vmem [#allocation2], 4
    %v250 = vld [vmem:[%s249] sm:$0x3]
    %252 = vrot.lane.b32.xlu0 %v248, 32
    %v253 = vpop.permute.xlu0 %252
    %v254 = vsel %vm48, %v253, 0
    %256 = vmatprep.subr.mxu0 0.0
    %257 = vmatpush1.msra.mxu0 0.0
    %258 = vmatprep.subr.mxu0 0.0
    %259 = vmatpush1.msra.mxu0 0.0
    %260 = vmatprep.subr.mxu0 0.0
    %261 = vmatpush1.msra.mxu0 0.0
    %262 = vmatprep.subr.mxu0 0.0
    %263 = vmatpush1.msra.mxu0 0.0
    %264 = vmatprep.subr.mxu0 0.0
    %265 = vmatpush1.msra.mxu0 0.0
    %266 = vmatprep.subr.mxu0 0.0
    %267 = vmatpush1.msra.mxu0 0.0
    %268 = vmatprep.subr.mxu0 0.0
    %269 = vmatpush1.msra.mxu0 0.0
    %270 = vmatprep.subr.mxu0 0.0
    %271 = vmatpush1.msra.mxu0 0.0
    %272 = vmatprep.subr.mxu0 0.0
    %273 = vmatpush1.msra.mxu0 0.0
    %274 = vmatprep.subr.mxu0 0.0
    %275 = vmatpush1.msra.mxu0 0.0
    %276 = vmatprep.subr.mxu0 0.0
    %277 = vmatpush1.msra.mxu0 0.0
    %278 = vmatprep.subr.mxu0 0.0
    %279 = vmatpush1.msra.mxu0 0.0
    %280 = vmatprep.subr.mxu0 0.0
    %281 = vmatpush1.msra.mxu0 %v46
    %282 = vmatprep.subr.mxu0 0.0
    %283 = vmatpush1.msra.mxu0 %v45
    %284 = vmatprep.subr.mxu0 0.0
    %285 = vmatpush1.msra.mxu0 %v44
    %286 = vmatprep.subr.mxu0 0.0
    %287 = vmatpush1.msra.mxu0 %v43
    %288 = vmatprep.subr.mxu0 0.0
    %289 = vmatpush2.msra.mxu0 0.0
    %290 = vmatprep.subr.mxu0 0.0
    %291 = vmatpush2.msra.mxu0 0.0
    %292 = vmatprep.subr.mxu0 0.0
    %293 = vmatpush2.msra.mxu0 0.0
    %294 = vmatprep.subr.mxu0 0.0
    %295 = vmatpush2.msra.mxu0 0.0
    %296 = vmatprep.subr.mxu0 0.0
    %297 = vmatpush2.msra.mxu0 0.0
    %298 = vmatprep.subr.mxu0 0.0
    %299 = vmatpush2.msra.mxu0 0.0
    %300 = vmatprep.subr.mxu0 0.0
    %301 = vmatpush2.msra.mxu0 0.0
    %302 = vmatprep.subr.mxu0 0.0
    %303 = vmatpush2.msra.mxu0 0.0
    %304 = vmatprep.subr.mxu0 0.0
    %305 = vmatpush2.msra.mxu0 0.0
    %306 = vmatprep.subr.mxu0 0.0
    %307 = vmatpush2.msra.mxu0 0.0
    %308 = vmatprep.subr.mxu0 0.0
    %309 = vmatpush2.msra.mxu0 0.0
    %310 = vmatprep.subr.mxu0 0.0
    %311 = vmatpush2.msra.mxu0 0.0
    %312 = vmatprep.subr.mxu0 0.0
    %313 = vmatpush2.msra.mxu0 0.0
    %314 = vmatprep.subr.mxu0 0.0
    %315 = vmatpush2.msra.mxu0 0.0
    %316 = vmatprep.subr.mxu0 0.0
    %317 = vmatpush2.msra.mxu0 0.0
    %318 = vmatprep.subr.mxu0 0.0
    %319 = vmatpush2.msra.mxu0 0.0
    %320 = vmatprep.mubr.f32.mxu0 0.0
    %321 = vmatmul.mubr.f32.gmra.mxu0 %v254
    %v322 = vpop.f32.mrf.mxu0
    %v323 = vadd.f32 0.0, %v322
    %v324 = vpop.f32.mrf.mxu0
    %325 = vdwg.mxu0
    %v326 = vadd.f32 %v250, %v323
    %v327 = vxor.u32 %v326, 2147483648
    %v328 = vmul.f32 %v327, 1.442695
    %v329 = vpow.pop %v328
    %v330 = vadd.f32 %v329, 1.0
    %v331 = vrcp.pop %v330
    %v332 = vmul.f32 1.0, %v331
    %v333 = vtanh.pop %v326
    %v334 = vmul.f32 %v332, %v242
    %336 = vrot.lane.b32.xlu0 %v333, 64
    %v337 = vpop.permute.xlu0 %336
    %v339 = vmul.f32 %v332, %v337
    %341 = vrot.lane.b32.xlu0 %v339, 32
    %v342 = vpop.permute.xlu0 %341
    %v344 = vadd.f32 %v334, %v342
    %v345 = vtanh.pop %v344
    %347 = vrot.lane.b32.xlu0 %v345, 64
    %v348 = vpop.permute.xlu0 %347
    %v350 = vmul.f32 %v332, %v348
    %s351 = scalar_lea.vmem [#allocation2], 6
    %v352 = vld [vmem:[%s351] sm:$0x3]
    %354 = vrot.lane.b32.xlu0 %v350, 32
    %v355 = vpop.permute.xlu0 %354
    %v356 = vsel %vm48, %v355, 0
    %358 = vmatprep.subr.mxu0 0.0
    %359 = vmatpush1.msra.mxu0 0.0
    %360 = vmatprep.subr.mxu0 0.0
    %361 = vmatpush1.msra.mxu0 0.0
    %362 = vmatprep.subr.mxu0 0.0
    %363 = vmatpush1.msra.mxu0 0.0
    %364 = vmatprep.subr.mxu0 0.0
    %365 = vmatpush1.msra.mxu0 0.0
    %366 = vmatprep.subr.mxu0 0.0
    %367 = vmatpush1.msra.mxu0 0.0
    %368 = vmatprep.subr.mxu0 0.0
    %369 = vmatpush1.msra.mxu0 0.0
    %370 = vmatprep.subr.mxu0 0.0
    %371 = vmatpush1.msra.mxu0 0.0
    %372 = vmatprep.subr.mxu0 0.0
    %373 = vmatpush1.msra.mxu0 0.0
    %374 = vmatprep.subr.mxu0 0.0
    %375 = vmatpush1.msra.mxu0 0.0
    %376 = vmatprep.subr.mxu0 0.0
    %377 = vmatpush1.msra.mxu0 0.0
    %378 = vmatprep.subr.mxu0 0.0
    %379 = vmatpush1.msra.mxu0 0.0
    %380 = vmatprep.subr.mxu0 0.0
    %381 = vmatpush1.msra.mxu0 0.0
    %382 = vmatprep.subr.mxu0 0.0
    %383 = vmatpush1.msra.mxu0 %v46
    %384 = vmatprep.subr.mxu0 0.0
    %385 = vmatpush1.msra.mxu0 %v45
    %386 = vmatprep.subr.mxu0 0.0
    %387 = vmatpush1.msra.mxu0 %v44
    %388 = vmatprep.subr.mxu0 0.0
    %389 = vmatpush1.msra.mxu0 %v43
    %390 = vmatprep.subr.mxu0 0.0
    %391 = vmatpush2.msra.mxu0 0.0
    %392 = vmatprep.subr.mxu0 0.0
    %393 = vmatpush2.msra.mxu0 0.0
    %394 = vmatprep.subr.mxu0 0.0
    %395 = vmatpush2.msra.mxu0 0.0
    %396 = vmatprep.subr.mxu0 0.0
    %397 = vmatpush2.msra.mxu0 0.0
    %398 = vmatprep.subr.mxu0 0.0
    %399 = vmatpush2.msra.mxu0 0.0
    %400 = vmatprep.subr.mxu0 0.0
    %401 = vmatpush2.msra.mxu0 0.0
    %402 = vmatprep.subr.mxu0 0.0
    %403 = vmatpush2.msra.mxu0 0.0
    %404 = vmatprep.subr.mxu0 0.0
    %405 = vmatpush2.msra.mxu0 0.0
    %406 = vmatprep.subr.mxu0 0.0
    %407 = vmatpush2.msra.mxu0 0.0
    %408 = vmatprep.subr.mxu0 0.0
    %409 = vmatpush2.msra.mxu0 0.0
    %410 = vmatprep.subr.mxu0 0.0
    %411 = vmatpush2.msra.mxu0 0.0
    %412 = vmatprep.subr.mxu0 0.0
    %413 = vmatpush2.msra.mxu0 0.0
    %414 = vmatprep.subr.mxu0 0.0
    %415 = vmatpush2.msra.mxu0 0.0
    %416 = vmatprep.subr.mxu0 0.0
    %417 = vmatpush2.msra.mxu0 0.0
    %418 = vmatprep.subr.mxu0 0.0
    %419 = vmatpush2.msra.mxu0 0.0
    %420 = vmatprep.subr.mxu0 0.0
    %421 = vmatpush2.msra.mxu0 0.0
    %422 = vmatprep.mubr.f32.mxu0 0.0
    %423 = vmatmul.mubr.f32.gmra.mxu0 %v356
    %v424 = vpop.f32.mrf.mxu0
    %v425 = vadd.f32 0.0, %v424
    %v426 = vpop.f32.mrf.mxu0
    %427 = vdwg.mxu0
    %v428 = vadd.f32 %v352, %v425
    %v429 = vxor.u32 %v428, 2147483648
    %v430 = vmul.f32 %v429, 1.442695
    %v431 = vpow.pop %v430
    %v432 = vadd.f32 %v431, 1.0
    %v433 = vrcp.pop %v432
    %v434 = vmul.f32 1.0, %v433
    %v435 = vtanh.pop %v428
    %v436 = vmul.f32 %v434, %v344
    %438 = vrot.lane.b32.xlu0 %v435, 64
    %v439 = vpop.permute.xlu0 %438
    %v441 = vmul.f32 %v434, %v439
    %443 = vrot.lane.b32.xlu0 %v441, 32
    %v444 = vpop.permute.xlu0 %443
    %v446 = vadd.f32 %v436, %v444
    %v447 = vtanh.pop %v446
    %449 = vrot.lane.b32.xlu0 %v447, 64
    %v450 = vpop.permute.xlu0 %449
    %v452 = vmul.f32 %v434, %v450
    %s453 = scalar_lea.vmem [#allocation2], 8
    %v454 = vld [vmem:[%s453] sm:$0x3]
    %456 = vrot.lane.b32.xlu0 %v452, 32
    %v457 = vpop.permute.xlu0 %456
    %v458 = vsel %vm48, %v457, 0
    %460 = vmatprep.subr.mxu0 0.0
    %461 = vmatpush1.msra.mxu0 0.0
    %462 = vmatprep.subr.mxu0 0.0
    %463 = vmatpush1.msra.mxu0 0.0
    %464 = vmatprep.subr.mxu0 0.0
    %465 = vmatpush1.msra.mxu0 0.0
    %466 = vmatprep.subr.mxu0 0.0
    %467 = vmatpush1.msra.mxu0 0.0
    %468 = vmatprep.subr.mxu0 0.0
    %469 = vmatpush1.msra.mxu0 0.0
    %470 = vmatprep.subr.mxu0 0.0
    %471 = vmatpush1.msra.mxu0 0.0
    %472 = vmatprep.subr.mxu0 0.0
    %473 = vmatpush1.msra.mxu0 0.0
    %474 = vmatprep.subr.mxu0 0.0
    %475 = vmatpush1.msra.mxu0 0.0
    %476 = vmatprep.subr.mxu0 0.0
    %477 = vmatpush1.msra.mxu0 0.0
    %478 = vmatprep.subr.mxu0 0.0
    %479 = vmatpush1.msra.mxu0 0.0
    %480 = vmatprep.subr.mxu0 0.0
    %481 = vmatpush1.msra.mxu0 0.0
    %482 = vmatprep.subr.mxu0 0.0
    %483 = vmatpush1.msra.mxu0 0.0
    %484 = vmatprep.subr.mxu0 0.0
    %485 = vmatpush1.msra.mxu0 %v46
    %486 = vmatprep.subr.mxu0 0.0
    %487 = vmatpush1.msra.mxu0 %v45
    %488 = vmatprep.subr.mxu0 0.0
    %489 = vmatpush1.msra.mxu0 %v44
    %490 = vmatprep.subr.mxu0 0.0
    %491 = vmatpush1.msra.mxu0 %v43
    %492 = vmatprep.subr.mxu0 0.0
    %493 = vmatpush2.msra.mxu0 0.0
    %494 = vmatprep.subr.mxu0 0.0
    %495 = vmatpush2.msra.mxu0 0.0
    %496 = vmatprep.subr.mxu0 0.0
    %497 = vmatpush2.msra.mxu0 0.0
    %498 = vmatprep.subr.mxu0 0.0
    %499 = vmatpush2.msra.mxu0 0.0
    %500 = vmatprep.subr.mxu0 0.0
    %501 = vmatpush2.msra.mxu0 0.0
    %502 = vmatprep.subr.mxu0 0.0
    %503 = vmatpush2.msra.mxu0 0.0
    %504 = vmatprep.subr.mxu0 0.0
    %505 = vmatpush2.msra.mxu0 0.0
    %506 = vmatprep.subr.mxu0 0.0
    %507 = vmatpush2.msra.mxu0 0.0
    %508 = vmatprep.subr.mxu0 0.0
    %509 = vmatpush2.msra.mxu0 0.0
    %510 = vmatprep.subr.mxu0 0.0
    %511 = vmatpush2.msra.mxu0 0.0
    %512 = vmatprep.subr.mxu0 0.0
    %513 = vmatpush2.msra.mxu0 0.0
    %514 = vmatprep.subr.mxu0 0.0
    %515 = vmatpush2.msra.mxu0 0.0
    %516 = vmatprep.subr.mxu0 0.0
    %517 = vmatpush2.msra.mxu0 0.0
    %518 = vmatprep.subr.mxu0 0.0
    %519 = vmatpush2.msra.mxu0 0.0
    %520 = vmatprep.subr.mxu0 0.0
    %521 = vmatpush2.msra.mxu0 0.0
    %522 = vmatprep.subr.mxu0 0.0
    %523 = vmatpush2.msra.mxu0 0.0
    %524 = vmatprep.mubr.f32.mxu0 0.0
    %525 = vmatmul.mubr.f32.gmra.mxu0 %v458
    %v526 = vpop.f32.mrf.mxu0
    %v527 = vadd.f32 0.0, %v526
    %v528 = vpop.f32.mrf.mxu0
    %529 = vdwg.mxu0
    %v530 = vadd.f32 %v454, %v527
    %v531 = vxor.u32 %v530, 2147483648
    %v532 = vmul.f32 %v531, 1.442695
    %v533 = vpow.pop %v532
    %v534 = vadd.f32 %v533, 1.0
    %v535 = vrcp.pop %v534
    %v536 = vmul.f32 1.0, %v535
    %v537 = vtanh.pop %v530
    %v538 = vmul.f32 %v536, %v446
    %540 = vrot.lane.b32.xlu0 %v537, 64
    %v541 = vpop.permute.xlu0 %540
    %v543 = vmul.f32 %v536, %v541
    %545 = vrot.lane.b32.xlu0 %v543, 32
    %v546 = vpop.permute.xlu0 %545
    %v548 = vadd.f32 %v538, %v546
    %v549 = vtanh.pop %v548
    %551 = vrot.lane.b32.xlu0 %v549, 64
    %v552 = vpop.permute.xlu0 %551
    %v554 = vmul.f32 %v536, %v552
    %s555 = scalar_lea.vmem [#allocation2], 10
    %v556 = vld [vmem:[%s555] sm:$0x3]
    %558 = vrot.lane.b32.xlu0 %v554, 32
    %v559 = vpop.permute.xlu0 %558
    %v560 = vsel %vm48, %v559, 0
    %562 = vmatprep.subr.mxu0 0.0
    %563 = vmatpush1.msra.mxu0 0.0
    %564 = vmatprep.subr.mxu0 0.0
    %565 = vmatpush1.msra.mxu0 0.0
    %566 = vmatprep.subr.mxu0 0.0
    %567 = vmatpush1.msra.mxu0 0.0
    %568 = vmatprep.subr.mxu0 0.0
    %569 = vmatpush1.msra.mxu0 0.0
    %570 = vmatprep.subr.mxu0 0.0
    %571 = vmatpush1.msra.mxu0 0.0
    %572 = vmatprep.subr.mxu0 0.0
    %573 = vmatpush1.msra.mxu0 0.0
    %574 = vmatprep.subr.mxu0 0.0
    %575 = vmatpush1.msra.mxu0 0.0
    %576 = vmatprep.subr.mxu0 0.0
    %577 = vmatpush1.msra.mxu0 0.0
    %578 = vmatprep.subr.mxu0 0.0
    %579 = vmatpush1.msra.mxu0 0.0
    %580 = vmatprep.subr.mxu0 0.0
    %581 = vmatpush1.msra.mxu0 0.0
    %582 = vmatprep.subr.mxu0 0.0
    %583 = vmatpush1.msra.mxu0 0.0
    %584 = vmatprep.subr.mxu0 0.0
    %585 = vmatpush1.msra.mxu0 0.0
    %586 = vmatprep.subr.mxu0 0.0
    %587 = vmatpush1.msra.mxu0 %v46
    %588 = vmatprep.subr.mxu0 0.0
    %589 = vmatpush1.msra.mxu0 %v45
    %590 = vmatprep.subr.mxu0 0.0
    %591 = vmatpush1.msra.mxu0 %v44
    %592 = vmatprep.subr.mxu0 0.0
    %593 = vmatpush1.msra.mxu0 %v43
    %594 = vmatprep.subr.mxu0 0.0
    %595 = vmatpush2.msra.mxu0 0.0
    %596 = vmatprep.subr.mxu0 0.0
    %597 = vmatpush2.msra.mxu0 0.0
    %598 = vmatprep.subr.mxu0 0.0
    %599 = vmatpush2.msra.mxu0 0.0
    %600 = vmatprep.subr.mxu0 0.0
    %601 = vmatpush2.msra.mxu0 0.0
    %602 = vmatprep.subr.mxu0 0.0
    %603 = vmatpush2.msra.mxu0 0.0
    %604 = vmatprep.subr.mxu0 0.0
    %605 = vmatpush2.msra.mxu0 0.0
    %606 = vmatprep.subr.mxu0 0.0
    %607 = vmatpush2.msra.mxu0 0.0
    %608 = vmatprep.subr.mxu0 0.0
    %609 = vmatpush2.msra.mxu0 0.0
    %610 = vmatprep.subr.mxu0 0.0
    %611 = vmatpush2.msra.mxu0 0.0
    %612 = vmatprep.subr.mxu0 0.0
    %613 = vmatpush2.msra.mxu0 0.0
    %614 = vmatprep.subr.mxu0 0.0
    %615 = vmatpush2.msra.mxu0 0.0
    %616 = vmatprep.subr.mxu0 0.0
    %617 = vmatpush2.msra.mxu0 0.0
    %618 = vmatprep.subr.mxu0 0.0
    %619 = vmatpush2.msra.mxu0 0.0
    %620 = vmatprep.subr.mxu0 0.0
    %621 = vmatpush2.msra.mxu0 0.0
    %622 = vmatprep.subr.mxu0 0.0
    %623 = vmatpush2.msra.mxu0 0.0
    %624 = vmatprep.subr.mxu0 0.0
    %625 = vmatpush2.msra.mxu0 0.0
    %626 = vmatprep.mubr.f32.mxu0 0.0
    %627 = vmatmul.mubr.f32.gmra.mxu0 %v560
    %v628 = vpop.f32.mrf.mxu0
    %v629 = vadd.f32 0.0, %v628
    %v630 = vpop.f32.mrf.mxu0
    %631 = vdwg.mxu0
    %v632 = vadd.f32 %v556, %v629
    %v633 = vxor.u32 %v632, 2147483648
    %v634 = vmul.f32 %v633, 1.442695
    %v635 = vpow.pop %v634
    %v636 = vadd.f32 %v635, 1.0
    %v637 = vrcp.pop %v636
    %v638 = vmul.f32 1.0, %v637
    %v639 = vtanh.pop %v632
    %v640 = vmul.f32 %v638, %v548
    %642 = vrot.lane.b32.xlu0 %v639, 64
    %v643 = vpop.permute.xlu0 %642
    %v645 = vmul.f32 %v638, %v643
    %647 = vrot.lane.b32.xlu0 %v645, 32
    %v648 = vpop.permute.xlu0 %647
    %v650 = vadd.f32 %v640, %v648
    %v651 = vtanh.pop %v650
    %653 = vrot.lane.b32.xlu0 %v651, 64
    %v654 = vpop.permute.xlu0 %653
    %v656 = vmul.f32 %v638, %v654
    %s657 = scalar_lea.vmem [#allocation2], 12
    %v658 = vld [vmem:[%s657] sm:$0x3]
    %660 = vrot.lane.b32.xlu0 %v656, 32
    %v661 = vpop.permute.xlu0 %660
    %v662 = vsel %vm48, %v661, 0
    %664 = vmatprep.subr.mxu0 0.0
    %665 = vmatpush1.msra.mxu0 0.0
    %666 = vmatprep.subr.mxu0 0.0
    %667 = vmatpush1.msra.mxu0 0.0
    %668 = vmatprep.subr.mxu0 0.0
    %669 = vmatpush1.msra.mxu0 0.0
    %670 = vmatprep.subr.mxu0 0.0
    %671 = vmatpush1.msra.mxu0 0.0
    %672 = vmatprep.subr.mxu0 0.0
    %673 = vmatpush1.msra.mxu0 0.0
    %674 = vmatprep.subr.mxu0 0.0
    %675 = vmatpush1.msra.mxu0 0.0
    %676 = vmatprep.subr.mxu0 0.0
    %677 = vmatpush1.msra.mxu0 0.0
    %678 = vmatprep.subr.mxu0 0.0
    %679 = vmatpush1.msra.mxu0 0.0
    %680 = vmatprep.subr.mxu0 0.0
    %681 = vmatpush1.msra.mxu0 0.0
    %682 = vmatprep.subr.mxu0 0.0
    %683 = vmatpush1.msra.mxu0 0.0
    %684 = vmatprep.subr.mxu0 0.0
    %685 = vmatpush1.msra.mxu0 0.0
    %686 = vmatprep.subr.mxu0 0.0
    %687 = vmatpush1.msra.mxu0 0.0
    %688 = vmatprep.subr.mxu0 0.0
    %689 = vmatpush1.msra.mxu0 %v46
    %690 = vmatprep.subr.mxu0 0.0
    %691 = vmatpush1.msra.mxu0 %v45
    %692 = vmatprep.subr.mxu0 0.0
    %693 = vmatpush1.msra.mxu0 %v44
    %694 = vmatprep.subr.mxu0 0.0
    %695 = vmatpush1.msra.mxu0 %v43
    %696 = vmatprep.subr.mxu0 0.0
    %697 = vmatpush2.msra.mxu0 0.0
    %698 = vmatprep.subr.mxu0 0.0
    %699 = vmatpush2.msra.mxu0 0.0
    %700 = vmatprep.subr.mxu0 0.0
    %701 = vmatpush2.msra.mxu0 0.0
    %702 = vmatprep.subr.mxu0 0.0
    %703 = vmatpush2.msra.mxu0 0.0
    %704 = vmatprep.subr.mxu0 0.0
    %705 = vmatpush2.msra.mxu0 0.0
    %706 = vmatprep.subr.mxu0 0.0
    %707 = vmatpush2.msra.mxu0 0.0
    %708 = vmatprep.subr.mxu0 0.0
    %709 = vmatpush2.msra.mxu0 0.0
    %710 = vmatprep.subr.mxu0 0.0
    %711 = vmatpush2.msra.mxu0 0.0
    %712 = vmatprep.subr.mxu0 0.0
    %713 = vmatpush2.msra.mxu0 0.0
    %714 = vmatprep.subr.mxu0 0.0
    %715 = vmatpush2.msra.mxu0 0.0
    %716 = vmatprep.subr.mxu0 0.0
    %717 = vmatpush2.msra.mxu0 0.0
    %718 = vmatprep.subr.mxu0 0.0
    %719 = vmatpush2.msra.mxu0 0.0
    %720 = vmatprep.subr.mxu0 0.0
    %721 = vmatpush2.msra.mxu0 0.0
    %722 = vmatprep.subr.mxu0 0.0
    %723 = vmatpush2.msra.mxu0 0.0
    %724 = vmatprep.subr.mxu0 0.0
    %725 = vmatpush2.msra.mxu0 0.0
    %726 = vmatprep.subr.mxu0 0.0
    %727 = vmatpush2.msra.mxu0 0.0
    %728 = vmatprep.mubr.f32.mxu0 0.0
    %729 = vmatmul.mubr.f32.gmra.mxu0 %v662
    %v730 = vpop.f32.mrf.mxu0
    %v731 = vadd.f32 0.0, %v730
    %v732 = vpop.f32.mrf.mxu0
    %733 = vdwg.mxu0
    %v734 = vadd.f32 %v658, %v731
    %v735 = vxor.u32 %v734, 2147483648
    %v736 = vmul.f32 %v735, 1.442695
    %v737 = vpow.pop %v736
    %v738 = vadd.f32 %v737, 1.0
    %v739 = vrcp.pop %v738
    %v740 = vmul.f32 1.0, %v739
    %v741 = vtanh.pop %v734
    %v742 = vmul.f32 %v740, %v650
    %744 = vrot.lane.b32.xlu0 %v741, 64
    %v745 = vpop.permute.xlu0 %744
    %v747 = vmul.f32 %v740, %v745
    %749 = vrot.lane.b32.xlu0 %v747, 32
    %v750 = vpop.permute.xlu0 %749
    %v752 = vadd.f32 %v742, %v750
    %v753 = vtanh.pop %v752
    %755 = vrot.lane.b32.xlu0 %v753, 64
    %v756 = vpop.permute.xlu0 %755
    %v758 = vmul.f32 %v740, %v756
    %s759 = scalar_lea.vmem [#allocation2], 14
    %v760 = vld [vmem:[%s759] sm:$0x3]
    %762 = vrot.lane.b32.xlu0 %v758, 32
    %v763 = vpop.permute.xlu0 %762
    %v764 = vsel %vm48, %v763, 0
    %766 = vmatprep.subr.mxu0 0.0
    %767 = vmatpush1.msra.mxu0 0.0
    %768 = vmatprep.subr.mxu0 0.0
    %769 = vmatpush1.msra.mxu0 0.0
    %770 = vmatprep.subr.mxu0 0.0
    %771 = vmatpush1.msra.mxu0 0.0
    %772 = vmatprep.subr.mxu0 0.0
    %773 = vmatpush1.msra.mxu0 0.0
    %774 = vmatprep.subr.mxu0 0.0
    %775 = vmatpush1.msra.mxu0 0.0
    %776 = vmatprep.subr.mxu0 0.0
    %777 = vmatpush1.msra.mxu0 0.0
    %778 = vmatprep.subr.mxu0 0.0
    %779 = vmatpush1.msra.mxu0 0.0
    %780 = vmatprep.subr.mxu0 0.0
    %781 = vmatpush1.msra.mxu0 0.0
    %782 = vmatprep.subr.mxu0 0.0
    %783 = vmatpush1.msra.mxu0 0.0
    %784 = vmatprep.subr.mxu0 0.0
    %785 = vmatpush1.msra.mxu0 0.0
    %786 = vmatprep.subr.mxu0 0.0
    %787 = vmatpush1.msra.mxu0 0.0
    %788 = vmatprep.subr.mxu0 0.0
    %789 = vmatpush1.msra.mxu0 0.0
    %790 = vmatprep.subr.mxu0 0.0
    %791 = vmatpush1.msra.mxu0 %v46
    %792 = vmatprep.subr.mxu0 0.0
    %793 = vmatpush1.msra.mxu0 %v45
    %794 = vmatprep.subr.mxu0 0.0
    %795 = vmatpush1.msra.mxu0 %v44
    %796 = vmatprep.subr.mxu0 0.0
    %797 = vmatpush1.msra.mxu0 %v43
    %798 = vmatprep.subr.mxu0 0.0
    %799 = vmatpush2.msra.mxu0 0.0
    %800 = vmatprep.subr.mxu0 0.0
    %801 = vmatpush2.msra.mxu0 0.0
    %802 = vmatprep.subr.mxu0 0.0
    %803 = vmatpush2.msra.mxu0 0.0
    %804 = vmatprep.subr.mxu0 0.0
    %805 = vmatpush2.msra.mxu0 0.0
    %806 = vmatprep.subr.mxu0 0.0
    %807 = vmatpush2.msra.mxu0 0.0
    %808 = vmatprep.subr.mxu0 0.0
    %809 = vmatpush2.msra.mxu0 0.0
    %810 = vmatprep.subr.mxu0 0.0
    %811 = vmatpush2.msra.mxu0 0.0
    %812 = vmatprep.subr.mxu0 0.0
    %813 = vmatpush2.msra.mxu0 0.0
    %814 = vmatprep.subr.mxu0 0.0
    %815 = vmatpush2.msra.mxu0 0.0
    %816 = vmatprep.subr.mxu0 0.0
    %817 = vmatpush2.msra.mxu0 0.0
    %818 = vmatprep.subr.mxu0 0.0
    %819 = vmatpush2.msra.mxu0 0.0
    %820 = vmatprep.subr.mxu0 0.0
    %821 = vmatpush2.msra.mxu0 0.0
    %822 = vmatprep.subr.mxu0 0.0
    %823 = vmatpush2.msra.mxu0 0.0
    %824 = vmatprep.subr.mxu0 0.0
    %825 = vmatpush2.msra.mxu0 0.0
    %826 = vmatprep.subr.mxu0 0.0
    %827 = vmatpush2.msra.mxu0 0.0
    %828 = vmatprep.subr.mxu0 0.0
    %829 = vmatpush2.msra.mxu0 0.0
    %830 = vmatprep.mubr.f32.mxu0 0.0
    %831 = vmatmul.mubr.f32.gmra.mxu0 %v764
    %v832 = vpop.f32.mrf.mxu0
    %v833 = vadd.f32 0.0, %v832
    %v834 = vpop.f32.mrf.mxu0
    %835 = vdwg.mxu0
    %v836 = vadd.f32 %v760, %v833
    %v837 = vxor.u32 %v836, 2147483648
    %v838 = vmul.f32 %v837, 1.442695
    %v839 = vpow.pop %v838
    %v840 = vadd.f32 %v839, 1.0
    %v841 = vrcp.pop %v840
    %v842 = vmul.f32 1.0, %v841
    %v843 = vtanh.pop %v836
    %v844 = vmul.f32 %v842, %v752
    %846 = vrot.lane.b32.xlu0 %v843, 64
    %v847 = vpop.permute.xlu0 %846
    %v849 = vmul.f32 %v842, %v847
    %851 = vrot.lane.b32.xlu0 %v849, 32
    %v852 = vpop.permute.xlu0 %851
    %v854 = vadd.f32 %v844, %v852
    %v855 = vtanh.pop %v854
    %857 = vrot.lane.b32.xlu0 %v855, 64
    %v858 = vpop.permute.xlu0 %857
    %v860 = vmul.f32 %v842, %v858
    %862 = vrot.lane.b32.xlu0 %v860, 32
    %v863 = vpop.permute.xlu0 %862
    %vm865 = vcmask 254976
    %866 = vst.msk [vmem:[#allocation7] sm:$0x3] %vm865, %v863
    %868 = vrot.lane.b32.xlu0 %v854, 96
    %v869 = vpop.permute.xlu0 %868
    %871 = vst.msk [vmem:[#allocation8] sm:$0x3] %vm865, %v869
    // Predicated region
    $region18: #{tpu_custom_call.1} parent=1 // pred_check
      _
    $region19: #{tpu_custom_call.1} parent=1 // pred_check_branch
      %873 = sbr.rel (0) target = $region21
    $region20: #{tpu_custom_call.1} parent=1 // pred_region
      %s875 = ssub.s32 32, 32
      %876 = vsyncadd [#allocation4], %s875
      %s878 = sshll.u32 [#allocation7], 4
      %s879 = int_to_ptr.vmem [resolvable:$true] %s878
      %881 = dma.vmem_to_hbm [thread:$0]  %s879, 32, %s2, [#allocation4]
    $region21: #{tpu_custom_call.1} parent=1 // pred_fallthru
      _
    // Predicated region
    $region22: #{tpu_custom_call.1} parent=1 // pred_check
      _
    $region23: #{tpu_custom_call.1} parent=1 // pred_check_branch
      %883 = sbr.rel (0) target = $region25
    $region24: #{tpu_custom_call.1} parent=1 // pred_region
      %s885 = ssub.s32 32, 32
      %886 = vsyncadd [#allocation9], %s885
      %s888 = sshll.u32 [#allocation8], 4
      %s889 = int_to_ptr.vmem [resolvable:$true] %s888
      %891 = dma.vmem_to_hbm [thread:$0]  %s889, 32, %s3, [#allocation9]
    $region25: #{tpu_custom_call.1} parent=1 // pred_fallthru
      _
    // Predicated region
    $region26: #{tpu_custom_call.1} parent=1 // pred_check
      _
    $region27: #{tpu_custom_call.1} parent=1 // pred_check_branch
      %893 = sbr.rel (0) target = $region29
    $region28: #{tpu_custom_call.1} parent=1 // pred_region
      %894 = dma.done [#allocation4], 32
    $region29: #{tpu_custom_call.1} parent=1 // pred_fallthru
      _
    // Predicated region
    $region30: #{tpu_custom_call.1} parent=1 // pred_check
      _
    $region31: #{tpu_custom_call.1} parent=1 // pred_check_branch
      %896 = sbr.rel (0) target = $region33
    $region32: #{tpu_custom_call.1} parent=1 // pred_region
      %897 = dma.done [#allocation9], 32
    $region33: #{tpu_custom_call.1} parent=1 // pred_fallthru
      _
    %898 = vsyncpa [#allocation3], 1
    %899 = vsyncpa [#allocation6], 1
    %900 = vsyncpa [#allocation4], 1
    %901 = vsyncpa [#allocation9], 1

</llo_original>
